<compile_context>
chip_gen: v5e
topology: v5e:2x2
jax: 0.10.0
libtpu: 0.0.40
codegen_flags: <defaults>
</compile_context>

<pallas_src>
import functools

import jax
import jax.numpy as jnp
from jax.experimental import pallas as pl
from jax.experimental.pallas import tpu as pltpu


def _cossim_ce_kernel(w_ref, loss_ref, gram_ref, sq_ref, *, matmul_dtype=None):
    # Grid: (block b [parallel], contraction chunk k [arbitrary, last]).
    ki = pl.program_id(1)
    nk = pl.num_programs(1)

    @pl.when(ki == 0)
    def _init():
        gram_ref[...] = jnp.zeros_like(gram_ref)
        sq_ref[...] = jnp.zeros_like(sq_ref)

    w = w_ref[...]                                        # (N, tk) float32

    # Row squared-norm partial sums (XLU reduce, overlaps the MXU matmul).
    sq_ref[...] += jnp.sum(w * w, axis=-1, keepdims=True)

    # Gram partial: G += W_k @ W_k^T on the MXU with an f32 accumulator.
    # Optionally feed bf16 operands (bf16-native MXU on v6e/v7x); opt-in only.
    wd = w if matmul_dtype is None else w.astype(matmul_dtype)
    gram_ref[...] += jax.lax.dot_general(
        wd, wd, (((1,), (1,)), ((), ())),
        preferred_element_type=jnp.float32)

    @pl.when(ki == nk - 1)
    def _finalize():
        n = gram_ref.shape[0]
        sq = sq_ref[...]                                  # (N, 1) = ||w_i||^2
        # inv_norm = 1 / max(||w_i||, 1e-8); clamping sq at 1e-16 reproduces
        # F.cosine_similarity's eps clamp exactly.  rsqrt uses the EUP slot
        # instead of N*D f32 divides on the VALU.
        inv_norm = jax.lax.rsqrt(jnp.maximum(sq, 1e-16))  # (N, 1)
        inv_norm_row = jnp.transpose(inv_norm)            # (1, N)

        # cos(i, j) = G[i, j] * inv_norm[i] * inv_norm[j]  (post-matmul scale).
        logits = gram_ref[...] * inv_norm * inv_norm_row  # (N, N)
        # Diagonal straight from the row norms (exact, incl. eps clamp).
        diag = sq * inv_norm * inv_norm                   # (N, 1)

        # Symmetric logits -> one CE pass == (loss_i + loss_t) / 2.
        m = jnp.max(logits, axis=-1, keepdims=True)                       # (N,1)
        lse = jnp.log(jnp.sum(jnp.exp(logits - m), axis=-1,
                              keepdims=True)) + m                         # (N,1)
        loss = jnp.sum(lse - diag, axis=0, keepdims=True) * (1.0 / n)     # (1,1)
        loss_ref[...] = jnp.reshape(loss, (1, 1, 1))


def _choose_tk(d, max_tk=2048):
    """Contraction-axis tile: a multiple of 128 dividing D (or D itself) so
    the BlockSpec satisfies the (8, 128) constraint."""
    if d <= max_tk or d % 128 != 0:
        return d
    for tk in range(max_tk - max_tk % 128, 0, -128):
        if d % tk == 0:
            return tk
    return d


def _vmem_limit_bytes(n, tk):
    """Scoped-VMEM request sized from the actual footprint (input tile is
    double-buffered by the pipeline) plus generous headroom, clamped to stay
    under v7x's 64 MiB physical VMEM."""
    needed = 2 * (n * tk * 4) + (n * n * 4) + (n * 4) + (1 << 20)
    return int(min(56 * 1024 * 1024, max(32 * 1024 * 1024, 2 * needed)))


def _group_losses(w_stack, matmul_dtype=None):
    """Per-block losses for a stack of same-shape flattened conv1 weights.

    w_stack: (B, N, D) float32.  Returns (B, 1, 1) float32 per-block losses.
    """
    b, n, d = w_stack.shape
    tk = _choose_tk(d)
    nk = d // tk
    kernel = functools.partial(_cossim_ce_kernel, matmul_dtype=matmul_dtype)
    return pl.pallas_call(
        kernel,
        out_shape=jax.ShapeDtypeStruct((b, 1, 1), jnp.float32),
        grid_spec=pltpu.PrefetchScalarGridSpec(
            num_scalar_prefetch=0,
            grid=(b, nk),                       # reduction axis (k) last
            in_specs=[pl.BlockSpec((pl.Squeezed(), n, tk),
                                   lambda bi, ki: (bi, 0, ki))],
            out_specs=pl.BlockSpec((1, 1, 1), lambda bi, ki: (bi, 0, 0)),
            scratch_shapes=[pltpu.VMEM((n, n), jnp.float32),   # Gram accum
                            pltpu.VMEM((n, 1), jnp.float32)],  # ||w_i||^2 accum
        ),
        compiler_params=pltpu.CompilerParams(
            # Block axis parallel (2 TCs on v7x split it; no-op on v5e/v6e),
            # contraction axis arbitrary (resident accumulator).
            dimension_semantics=("parallel", "arbitrary"),
            vmem_limit_bytes=_vmem_limit_bytes(n, tk)),
    )(w_stack)


def base_loss(conv1_weights, lambd, matmul_dtype=None):
    """BaseLoss.forward over a 'model' represented as the list of conv1
    weights of its ResNetBasicblock modules (the only modules it touches).
    Same-shape blocks are stacked and handled by a single fused pallas_call."""
    groups = {}
    for w4 in conv1_weights:
        w2 = jnp.reshape(w4, (w4.shape[0], -1)).astype(jnp.float32)
        groups.setdefault(w2.shape, []).append(w2)

    total = jnp.float32(0.0)
    for _, ws in groups.items():
        stacked = jnp.stack(ws, axis=0)                  # (B, N, D)
        total = total + jnp.sum(_group_losses(stacked, matmul_dtype))
    return total * jnp.float32(lambd)


# ---- pure-JAX reference (correctness check only) ---------------------------
def _base_loss_ref(conv1_weights, lambd):
    total = jnp.float32(0.0)
    for w4 in conv1_weights:
        w = jnp.reshape(w4, (w4.shape[0], -1)).astype(jnp.float32)
        n = w.shape[0]
        norm = jnp.maximum(jnp.linalg.norm(w, axis=-1, keepdims=True), 1e-8)
        wn = w / norm
        logits = wn @ wn.T
        idx = jnp.arange(n)

        def ce(lg):
            lse = jax.scipy.special.logsumexp(lg, axis=-1)
            return jnp.mean(lse - lg[idx, idx])

        total = total + (ce(logits) + ce(logits.T)) * 0.5
    return total * jnp.float32(lambd)


if __name__ == "__main__":
    key = jax.random.PRNGKey(0)
    k1, k2, k3, k4 = jax.random.split(key, 4)

    # Deterministic synthetic "model": four ResNetBasicblock conv1 weights,
    # two per stage — same-shape blocks exercise the fused (B, K) grid.
    conv1_ws = [
        0.1 * jax.random.normal(k1, (8, 4, 3, 3), dtype=jnp.float32),
        0.1 * jax.random.normal(k2, (8, 4, 3, 3), dtype=jnp.float32),
        0.1 * jax.random.normal(k3, (16, 8, 3, 3), dtype=jnp.float32),
        0.1 * jax.random.normal(k4, (16, 8, 3, 3), dtype=jnp.float32),
    ]
    lambd = 0.5

    loss = jax.block_until_ready(base_loss(conv1_ws, lambd))
    ref = _base_loss_ref(conv1_ws, lambd)

    assert jnp.isfinite(loss), loss
    assert jnp.allclose(loss, ref, rtol=1e-4, atol=1e-5), (loss, ref)
    print("KERNEL_OK")
</pallas_src>

<mosaic_0001>
module attributes {stable_mosaic.version = 11 : i64} {
  func.func @_cossim_ce_kernel(%arg0: i32, %arg1: i32, %arg2: memref<1x8x36xf32, #tpu.memory_space<vmem>>, %arg3: memref<1x1x1xf32, #tpu.memory_space<vmem>>, %arg4: memref<8x8xf32, #tpu.memory_space<vmem>>, %arg5: memref<8x1xf32, #tpu.memory_space<vmem>>) attributes {dimension_semantics = [#tpu.dimension_semantics<parallel>, #tpu.dimension_semantics<arbitrary>], iteration_bounds = array<i64: 2, 1>, scalar_prefetch = 0 : i64, scratch_operands = 2 : i64, tpu.core_type = #tpu.core_type<tc>, window_params = [{transform_indices = @transform_0, window_bounds = array<i64: 1, 8, 36>}, {transform_indices = @transform_1, window_bounds = array<i64: 1, 1, 1>}]} {
    %c0_i32 = arith.constant 0 : i32
    %0 = arith.cmpi eq, %arg1, %c0_i32 : i32
    %1 = arith.extui %0 : i1 to i32
    %c0_i32_0 = arith.constant 0 : i32
    %2 = arith.cmpi ne, %1, %c0_i32_0 : i32
    scf.if %2 {
      %cst_14 = arith.constant 0.000000e+00 : f32
      %18 = vector.broadcast %cst_14 : f32 to vector<8x8xf32>
      %c0_15 = arith.constant 0 : index
      %c0_16 = arith.constant 0 : index
      %19 = vector.load %arg4[%c0_15, %c0_16] : memref<8x8xf32, #tpu.memory_space<vmem>>, vector<8x8xf32>
      tpu.vector_store %arg4[%c0_15, %c0_16], %18 {strides = array<i32>} : memref<8x8xf32, #tpu.memory_space<vmem>>, vector<8x8xf32>,
      %cst_17 = arith.constant 0.000000e+00 : f32
      %20 = vector.broadcast %cst_17 : f32 to vector<8x1xf32>
      %c0_18 = arith.constant 0 : index
      %c0_19 = arith.constant 0 : index
      %21 = vector.load %arg5[%c0_18, %c0_19] : memref<8x1xf32, #tpu.memory_space<vmem>>, vector<8x1xf32>
      tpu.vector_store %arg5[%c0_18, %c0_19], %20 {strides = array<i32>} : memref<8x1xf32, #tpu.memory_space<vmem>>, vector<8x1xf32>,
    } else {
    }
    %c0 = arith.constant 0 : index
    %c0_1 = arith.constant 0 : index
    %c0_2 = arith.constant 0 : index
    %3 = vector.load %arg2[%c0, %c0_1, %c0_2] : memref<1x8x36xf32, #tpu.memory_space<vmem>>, vector<1x8x36xf32>
    %4 = vector.shape_cast %3 : vector<1x8x36xf32> to vector<8x36xf32>
    %c0_3 = arith.constant 0 : index
    %c0_4 = arith.constant 0 : index
    %5 = vector.load %arg5[%c0_3, %c0_4] : memref<8x1xf32, #tpu.memory_space<vmem>>, vector<8x1xf32>
    %6 = arith.mulf %4, %4 : vector<8x36xf32>
    %cst = arith.constant dense<0.000000e+00> : vector<8xf32>
    %7 = vector.multi_reduction <add>, %6, %cst [1] : vector<8x36xf32> to vector<8xf32>
    %8 = vector.shape_cast %7 : vector<8xf32> to vector<8x1xf32>
    %9 = arith.addf %5, %8 : vector<8x1xf32>
    %c0_5 = arith.constant 0 : index
    %c0_6 = arith.constant 0 : index
    %10 = vector.load %arg5[%c0_5, %c0_6] : memref<8x1xf32, #tpu.memory_space<vmem>>, vector<8x1xf32>
    tpu.vector_store %arg5[%c0_5, %c0_6], %9 {strides = array<i32>} : memref<8x1xf32, #tpu.memory_space<vmem>>, vector<8x1xf32>,
    %c0_7 = arith.constant 0 : index
    %c0_8 = arith.constant 0 : index
    %11 = vector.load %arg4[%c0_7, %c0_8] : memref<8x8xf32, #tpu.memory_space<vmem>>, vector<8x8xf32>
    %cst_9 = arith.constant dense<0.000000e+00> : vector<8x8xf32>
    %12 = tpu.matmul %4, %4, %cst_9 {dimension_numbers = #tpu.dot_dimension_numbers<[1], [1], [0], [0], [0, 0, 1, 0], [], []>} : vector<8x36xf32>, vector<8x36xf32>, vector<8x8xf32> -> vector<8x8xf32>
    %13 = arith.addf %11, %12 : vector<8x8xf32>
    %c0_10 = arith.constant 0 : index
    %c0_11 = arith.constant 0 : index
    %14 = vector.load %arg4[%c0_10, %c0_11] : memref<8x8xf32, #tpu.memory_space<vmem>>, vector<8x8xf32>
    tpu.vector_store %arg4[%c0_10, %c0_11], %13 {strides = array<i32>} : memref<8x8xf32, #tpu.memory_space<vmem>>, vector<8x8xf32>,
    %c0_i32_12 = arith.constant 0 : i32
    %15 = arith.cmpi eq, %arg1, %c0_i32_12 : i32
    %16 = arith.extui %15 : i1 to i32
    %c0_i32_13 = arith.constant 0 : i32
    %17 = arith.cmpi ne, %16, %c0_i32_13 : i32
    scf.if %17 {
      %c0_14 = arith.constant 0 : index
      %c0_15 = arith.constant 0 : index
      %18 = vector.load %arg5[%c0_14, %c0_15] : memref<8x1xf32, #tpu.memory_space<vmem>>, vector<8x1xf32>
      %cst_16 = arith.constant 1.000000e-16 : f32
      %19 = vector.broadcast %cst_16 : f32 to vector<8x1xf32>
      %20 = arith.maximumf %18, %19 : vector<8x1xf32>
      %21 = math.rsqrt %20 : vector<8x1xf32>
      %22 = tpu.transpose %21, [1, 0] : vector<8x1xf32> -> vector<1x8xf32>
      %c0_17 = arith.constant 0 : index
      %c0_18 = arith.constant 0 : index
      %23 = vector.load %arg4[%c0_17, %c0_18] : memref<8x8xf32, #tpu.memory_space<vmem>>, vector<8x8xf32>
      %24 = vector.broadcast %21 : vector<8x1xf32> to vector<8x8xf32>
      %25 = arith.mulf %23, %24 : vector<8x8xf32>
      %26 = vector.broadcast %22 : vector<1x8xf32> to vector<8x8xf32>
      %27 = arith.mulf %25, %26 : vector<8x8xf32>
      %28 = arith.mulf %18, %21 : vector<8x1xf32>
      %29 = arith.mulf %28, %21 : vector<8x1xf32>
      %cst_19 = arith.constant dense<0xFF800000> : vector<8xf32>
      %30 = vector.multi_reduction <maximumf>, %27, %cst_19 [1] : vector<8x8xf32> to vector<8xf32>
      %31 = vector.shape_cast %30 : vector<8xf32> to vector<8x1xf32>
      %32 = vector.broadcast %31 : vector<8x1xf32> to vector<8x8xf32>
      %33 = arith.subf %27, %32 : vector<8x8xf32>
      %34 = math.exp %33 : vector<8x8xf32>
      %cst_20 = arith.constant dense<0.000000e+00> : vector<8xf32>
      %35 = vector.multi_reduction <add>, %34, %cst_20 [1] : vector<8x8xf32> to vector<8xf32>
      %36 = vector.shape_cast %35 : vector<8xf32> to vector<8x1xf32>
      %37 = math.log %36 : vector<8x1xf32>
      %38 = arith.addf %37, %31 : vector<8x1xf32>
      %39 = arith.subf %38, %29 : vector<8x1xf32>
      %cst_21 = arith.constant dense<0.000000e+00> : vector<1xf32>
      %40 = vector.multi_reduction <add>, %39, %cst_21 [0] : vector<8x1xf32> to vector<1xf32>
      %41 = vector.shape_cast %40 : vector<1xf32> to vector<1x1xf32>
      %cst_22 = arith.constant 1.250000e-01 : f32
      %42 = vector.broadcast %cst_22 : f32 to vector<1x1xf32>
      %43 = arith.mulf %41, %42 : vector<1x1xf32>
      %44 = vector.shape_cast %43 : vector<1x1xf32> to vector<1x1x1xf32>
      %c0_23 = arith.constant 0 : index
      %c0_24 = arith.constant 0 : index
      %c0_25 = arith.constant 0 : index
      %45 = vector.load %arg3[%c0_23, %c0_24, %c0_25] : memref<1x1x1xf32, #tpu.memory_space<vmem>>, vector<1x1x1xf32>
      tpu.vector_store %arg3[%c0_23, %c0_24, %c0_25], %44 {strides = array<i32>} : memref<1x1x1xf32, #tpu.memory_space<vmem>>, vector<1x1x1xf32>,
    } else {
    }
    return
  }
  func.func @transform_0(%arg0: i32, %arg1: i32) -> (i32, i32, i32) {
    %c0_i32 = arith.constant 0 : i32
    %c0_i32_0 = arith.constant 0 : i32
    return %arg0, %c0_i32, %arg1 : i32, i32, i32
  }
  func.func @transform_1(%arg0: i32, %arg1: i32) -> (i32, i32, i32) {
    %c0_i32 = arith.constant 0 : i32
    %c0_i32_0 = arith.constant 0 : i32
    %c0_i32_1 = arith.constant 0 : i32
    return %arg0, %c0_i32, %c0_i32_0 : i32, i32, i32
  }
}

</mosaic_0001>

<llo_original>
// kernel: tpu_custom_call.1
$region0: #{tpu_custom_call.1}
  #allocation0 [shape = 'u32[]', space=smem, size = 0x4, offset = 0x4, fixed_abs, tag = 'smem constant byte address 0x4 - core index']
  #allocation1 [shape = 'u32[72,128]{1,0:T(1,128)}', space=vmem, size = 0x9000, scoped, tag = 'internal scratch']
  #allocation2 [shape = 'f32[8,8]{1,0:T(8,128)}', space=vmem, size = 0x1000, scoped, tag = 'scratch operand']
  #allocation3 [shape = 'f32[8,1]{1,0:T(8,128)}', space=vmem, size = 0x1000, scoped, tag = 'scratch operand']
  %s0 = inlined_call_operand.hbm [shape: f32[2,8,36], index: 0, kind: input, shape index: {}]
  %s1 = inlined_call_operand.vmem [shape: f32[2,1,1], index: 1, kind: output, shape index: {}]
  %s2 = sld [smem:[#allocation0]]
  $region49: #{tpu_custom_call.1} parent=0
    _
  %s4 = ssub.s32 1, %s2
  %s5 = scalar_select 0, %s4, %s2
  $region1: #{tpu_custom_call.1} parent=0
    #allocation4 [shape = 'u8[8192]{0}', space=vmem, size = 0x2000, scoped, tag = 'input window, operand 0']
    #allocation5 [shape = 's32[2]{0}', space=sflag, size = 0x8, scoped, tag = 'scoped memory for tpu_custom_call.1']
    %6 = vsyncpa [#allocation5], 0
    %s7 = scalar_lea.sflag [#allocation5], 1
    %8 = vsyncpa %s7, 0
    loop: start=0, step=1, limit=4
    $region2: #{tpu_custom_call.1} parent=1 // loop_pre_header
      _
    $region3: #{tpu_custom_call.1} parent=1 // loop_header
      %s10 = sphi 0, %s14
      %p11 = scmp.ge.s32.totalorder %s10, 4
      %s17 = sphi 0, %s29
      %s18 = sphi 0, %s25
      %s19 = sphi 0, %s17
      %s20 = sphi 0, %s18
      %s21 = sphi 0, %s19
      %s22 = sphi 0, %s20
      %s34 = sphi 0, %s36
      %s37 = sphi 0, %s34
      %s38 = sphi 0, %s37
      %s54 = sphi 0, %s38
      %s60 = sphi 0, %s62
      %s63 = sphi 0, %s60
      %s64 = sphi 0, %s63
      %s80 = sphi 0, %s64
    $region4: #{tpu_custom_call.1} parent=1 // loop_header_branch
      %13 = sbr.rel (%p11) target = $region8
    $region5: #{tpu_custom_call.1} parent=1 // loop_body
      %s15 = ssub.s32 %s10, 1
      %s16 = ssub.s32 %s10, 2
      %s23 = sadd.s32 1, %s18
      %p24 = scmp.ge.s32.totalorder %s23, 1
      %s25 = scalar_select %p24, 0, %s23
      %s26 = sadd.s32 1, %s17
      %s27 = scalar_select %p24, %s26, %s17
      %p28 = scmp.ge.s32.totalorder %s27, 2
      %s29 = scalar_select %p28, 0, %s27
      %s30 = ssub.s32 %s17, %s29
      %s31 = ssub.s32 %s18, %s25
      %s32 = sor.u32 %s30, %s31
      %p33 = scmp.eq.s32.totalorder %s32, 0
      %s35 = sadd.s32 %s34, 1
      %s36 = scalar_select %p33, %s34, %s35
      %p39 = pneg %p33
      %p40 = scmp.eq.s32.totalorder %s10, 1
      %p41 = por %p39, %p40
      %p42 = scmp.ne.s32.totalorder %s34, %s37
      %p43 = scmp.eq.s32.totalorder %s10, 0
      %p44 = por %p42, %p43
      %p45 = scmp.ne.s32.totalorder %s34, %s37
      %p46 = scmp.eq.s32.totalorder %s15, 1
      %p47 = por %p45, %p46
      %p48 = scmp.ne.s32.totalorder %s37, %s38
      %p49 = scmp.eq.s32.totalorder %s15, 0
      %p50 = por %p48, %p49
      %p51 = scmp.ne.s32.totalorder %s37, %s38
      %p52 = scmp.eq.s32.totalorder %s16, 1
      %p53 = por %p51, %p52
      %p55 = scmp.ne.s32.totalorder %s38, %s54
      %p56 = scmp.eq.s32.totalorder %s16, 0
      %p57 = por %p55, %p56
      %s58 = ssub.s32 %s17, %s29
      %p59 = scmp.eq.s32.totalorder %s58, 0
      %s61 = sadd.s32 %s60, 1
      %s62 = scalar_select %p59, %s60, %s61
      %p65 = pneg %p59
      %p66 = scmp.eq.s32.totalorder %s10, 1
      %p67 = por %p65, %p66
      %p68 = scmp.ne.s32.totalorder %s60, %s63
      %p69 = scmp.eq.s32.totalorder %s10, 0
      %p70 = por %p68, %p69
      %p71 = scmp.ne.s32.totalorder %s60, %s63
      %p72 = scmp.eq.s32.totalorder %s15, 1
      %p73 = por %p71, %p72
      %p74 = scmp.ne.s32.totalorder %s63, %s64
      %p75 = scmp.eq.s32.totalorder %s15, 0
      %p76 = por %p74, %p75
      %p77 = scmp.ne.s32.totalorder %s63, %s64
      %p78 = scmp.eq.s32.totalorder %s16, 1
      %p79 = por %p77, %p78
      %p81 = scmp.ne.s32.totalorder %s64, %s80
      %p82 = scmp.eq.s32.totalorder %s16, 0
      %p83 = por %p81, %p82
      %p84 = scmp.le.s32.totalorder 1, %s10
      %p85 = scmp.lt.s32.totalorder %s10, 3
      %p86 = pnand %p84, %p85
      %p87 = pneg %p86
      // Predicated region
      $region9: #{tpu_custom_call.1} parent=5 // pred_check
        _
      $region10: #{tpu_custom_call.1} parent=5 // pred_check_branch
        %89 = sbr.rel (%p86) target = $region12
      $region11: #{tpu_custom_call.1} parent=5 // pred_region
        %s90 = ssub.s32 %s10, 1
      $region12: #{tpu_custom_call.1} parent=5 // pred_fallthru
        _
      %p91 = scmp.lt.s32.totalorder %s10, 2
      // Predicated region
      $region13: #{tpu_custom_call.1} parent=5 // pred_check
        %p92 = pneg %p91
      $region14: #{tpu_custom_call.1} parent=5 // pred_check_branch
        %94 = sbr.rel (%p92) target = $region16
      $region15: #{tpu_custom_call.1} parent=5 // pred_region
        // Predicated region
        $region17: #{tpu_custom_call.1} parent=15 // pred_check
          %p95 = pneg %p44
        $region18: #{tpu_custom_call.1} parent=15 // pred_check_branch
          %97 = sbr.rel (%p95) target = $region20
        $region19: #{tpu_custom_call.1} parent=15 // pred_region
          %s98 = sand.u32 %s34, 1
          %s99 = scalar_lea.sflag [#allocation5], %s98
          %s100 = sand.u32 %s34, 1
          %s101 = smul.addr %s100, 8
          %s102 = scalar_lea.vmem [#allocation4], %s101
          %104 = vsyncadd %s99, 0
          %s105 = sadd.s32 %s18, %s17
          %s106 = smul.addr %s105, 8
          %s107 = scalar_lea.hbm %s0, %s106
          %s109 = sshll.u32 %s107, 4
          %s110 = int_to_ptr.hbm [resolvable:$true] %s109
          %s111 = sshll.u32 %s102, 4
          %s112 = int_to_ptr.vmem [resolvable:$true] %s111
          %114 = dma.hbm_to_vmem [thread:$0]  %s110, 128, %s112, %s99
        $region20: #{tpu_custom_call.1} parent=15 // pred_fallthru
          _
      $region16: #{tpu_custom_call.1} parent=5 // pred_fallthru
        _
      %p115 = scmp.le.s32.totalorder 1, %s10
      %p116 = scmp.lt.s32.totalorder %s10, 3
      %p117 = pnand %p115, %p116
      %p118 = pneg %p117
      // Predicated region
      $region21: #{tpu_custom_call.1} parent=5 // pred_check
        _
      $region22: #{tpu_custom_call.1} parent=5 // pred_check_branch
        %120 = sbr.rel (%p117) target = $region24
      $region23: #{tpu_custom_call.1} parent=5 // pred_region
        %s121 = ssub.s32 %s10, 1
        %s122 = sand.u32 %s37, 1
        %s123 = scalar_lea.sflag [#allocation5], %s122
        %s124 = sand.u32 %s37, 1
        %s125 = smul.addr %s124, 8
        %s126 = scalar_lea.vmem [#allocation4], %s125
        // Predicated region
        $region25: #{tpu_custom_call.1} parent=23 // pred_check
          %p127 = pneg %p50
        $region26: #{tpu_custom_call.1} parent=23 // pred_check_branch
          %129 = sbr.rel (%p127) target = $region28
        $region27: #{tpu_custom_call.1} parent=23 // pred_region
          %131 = dma.done %s123, 128
        $region28: #{tpu_custom_call.1} parent=23 // pred_fallthru
          _
        %s132 = sand.u32 %s37, 1
        %s133 = scalar_lea.sflag [#allocation5], %s132
        %s134 = sand.u32 %s37, 1
        %s135 = smul.addr %s134, 8
        %s136 = scalar_lea.vmem [#allocation4], %s135
        %p137 = pneg %p50
        %p138 = pneg %p47
        %p139 = pneg %p76
        %p140 = pneg %p73
        %p141 = scmp.lt.s32.totalorder %s19, 1
        %s142 = scalar_select %p141, %s19, 1
        %s143 = scalar_lea.vmem %s1, %s142
        %p144 = scmp.lt.s32.totalorder %s19, 1
        %s145 = scalar_select %p144, %s19, 1
        %s146 = scalar_lea.vmem %s1, %s145
        %p147 = scmp.eq.s32.totalorder %s20, 0
        // Predicated region
        $region29: #{tpu_custom_call.1} parent=23 // pred_check
          %p148 = pneg %p147
        $region30: #{tpu_custom_call.1} parent=23 // pred_check_branch
          %150 = sbr.rel (%p148) target = $region32
        $region31: #{tpu_custom_call.1} parent=23 // pred_region
          %vm151 = vcmask 64512
          %152 = vst.msk [vmem:[#allocation2] sm:$0xff] %vm151, 0.0
          %vm153 = vcmask 7168
          %154 = vst.msk [vmem:[#allocation3] sm:$0xff] %vm153, 0.0
        $region32: #{tpu_custom_call.1} parent=23 // pred_fallthru
          _
        %v155 = vld [vmem:[%s126] sm:$0xff]
        %v156 = vld [vmem:[#allocation3] sm:$0xff]
        %v157 = vmul.f32 %v155, %v155
        %vm158 = vcmask 293888
        %v159 = vsel %vm158, %v157, 0.0
        %160 = vadd.xlane.f32.xlu0 %v159
        %v161 = vpop.xlane.xlu0 %160
        %v162 = vadd.f32 %v156, %v161
        %vm163 = vcmask 7168
        %164 = vst.msk [vmem:[#allocation3] sm:$0xff] %vm163, %v162
        %v165 = vld [vmem:[#allocation2] sm:$0xff]
        %v167 = vsel %vm158, %v155, 0
        %169 = vmatpush.xpose.msra.mxu0 0.0
        %170 = vmatpush.xpose.msra.mxu0 0.0
        %171 = vmatpush.xpose.msra.mxu0 0.0
        %172 = vmatpush.xpose.msra.mxu0 0.0
        %173 = vmatpush.xpose.msra.mxu0 0.0
        %174 = vmatpush.xpose.msra.mxu0 0.0
        %175 = vmatpush.xpose.msra.mxu0 0.0
        %176 = vmatpush.xpose.msra.mxu0 0.0
        %177 = vmatpush.xpose.msra.mxu0 0.0
        %178 = vmatpush.xpose.msra.mxu0 0.0
        %179 = vmatpush.xpose.msra.mxu0 0.0
        %180 = vmatpush.xpose.msra.mxu0 0.0
        %181 = vmatpush.xpose.msra.mxu0 0.0
        %182 = vmatpush.xpose.msra.mxu0 0.0
        %183 = vmatpush.xpose.msra.mxu0 0.0
        %184 = vmatpush.xpose.msra.mxu0 %v167
        %185 = vmatmul.f32.gmra.mxu0 %v167
        %v186 = vpop.f32.mrf.mxu0
        %v187 = vadd.f32 0.0, %v186
        %188 = vdwg.mxu0
        %v189 = vadd.f32 %v165, %v187
        %vm190 = vcmask 64512
        %191 = vst.msk [vmem:[#allocation2] sm:$0xff] %vm190, %v189
        // Predicated region
        $region33: #{tpu_custom_call.1} parent=23 // pred_check
          %p192 = pneg %p147
        $region34: #{tpu_custom_call.1} parent=23 // pred_check_branch
          %194 = sbr.rel (%p192) target = $region36
        $region35: #{tpu_custom_call.1} parent=23 // pred_region
          %v195 = vld [vmem:[#allocation3] sm:$0xff]
          %v196 = vmax.f32 %v195, 1e-16
          %v197 = vrsqrt.pop %v196
          %v198 = vmul.f32 %v197, %v196
          %v199 = vmul.f32 %v198, %v197
          %v200 = vmul.f32 0.5, %v199
          %v201 = vsub.f32 1.5, %v200
          %v202 = vmul.f32 %v197, %v201
          %vm203 = vweird.f32 %v196
          %vm204 = vweird.f32 %v197
          %vm205 = vmor %vm203, %vm204
          %v206 = vsel %vm205, %v197, %v202
          %207 = vxpose.xlu0.b32.start [1/16] %v206, 128
          %208 = vxpose.xlu0.b32.cont [2/16] 0.0, 128
          %209 = vxpose.xlu0.b32.cont [3/16] 0.0, 128
          %210 = vxpose.xlu0.b32.cont [4/16] 0.0, 128
          %211 = vxpose.xlu0.b32.cont [5/16] 0.0, 128
          %212 = vxpose.xlu0.b32.cont [6/16] 0.0, 128
          %213 = vxpose.xlu0.b32.cont [7/16] 0.0, 128
          %214 = vxpose.xlu0.b32.cont [8/16] 0.0, 128
          %215 = vxpose.xlu0.b32.cont [9/16] 0.0, 128
          %216 = vxpose.xlu0.b32.cont [10/16] 0.0, 128
          %217 = vxpose.xlu0.b32.cont [11/16] 0.0, 128
          %218 = vxpose.xlu0.b32.cont [12/16] 0.0, 128
          %219 = vxpose.xlu0.b32.cont [13/16] 0.0, 128
          %220 = vxpose.xlu0.b32.cont [14/16] 0.0, 128
          %221 = vxpose.xlu0.b32.cont [15/16] 0.0, 128
          %222 = vxpose.xlu0.b32.end [16/16] 0.0, 128
          %v223 = vpop.trf.xlu0
          %v224 = vpop.trf.xlu0
          %v225 = vpop.trf.xlu0
          %v226 = vpop.trf.xlu0
          %v227 = vpop.trf.xlu0
          %v228 = vpop.trf.xlu0
          %v229 = vpop.trf.xlu0
          %v230 = vpop.trf.xlu0
          %v231 = vpop.trf.xlu0
          %v232 = vpop.trf.xlu0
          %v233 = vpop.trf.xlu0
          %v234 = vpop.trf.xlu0
          %v235 = vpop.trf.xlu0
          %v236 = vpop.trf.xlu0
          %v237 = vpop.trf.xlu0
          %v238 = vpop.trf.xlu0
          %v239 = vld [vmem:[#allocation2] sm:$0xff]
          %241 = vset.pattern.permute.xlu0 0
          %242 = vperm.xlu0 %241, %v206
          %v243 = vpop.permute.xlu0 %242
          %v245 = vmul.f32 %v239, %v243
          %v246 = vperm.slane %v223, 0
          %v247 = vmul.f32 %v245, %v246
          %v248 = vmul.f32 %v195, %v206
          %v249 = vmul.f32 %v248, %v206
          %v250 = vsel %vm190, %v247, -inf
          %251 = vmax.xlane.f32.xlu0 %v250
          %v252 = vpop.xlane.xlu0 %251
          %v253 = vsub.f32 %v247, %v252
          %v254 = vmul.f32 %v253, 1.442695
          %v255 = vpow.pop %v254
          %v256 = vsel %vm190, %v255, 0.0
          %257 = vadd.xlane.f32.xlu0 %v256
          %v258 = vpop.xlane.xlu0 %257
          %v259 = vlog2.pop %v258
          %v260 = vmul.f32 %v259, 0.6931472
          %v261 = vadd.f32 %v260, %v252
          %v262 = vsub.f32 %v261, %v249
          %v263 = vsel %vm163, %v262, 0.0
          %v264 = vrot.slane %v263, 4
          %v265 = vadd.f32 %v263, %v264
          %v266 = vrot.slane %v265, 2
          %v267 = vadd.f32 %v265, %v266
          %v268 = vrot.slane %v267, 1
          %v269 = vadd.f32 %v267, %v268
          %v270 = vmul.f32 %v269, 0.125
          %vm271 = vcmask 0
          %272 = vst.msk [vmem:[%s146] sm:$0x1] %vm271, %v270
        $region36: #{tpu_custom_call.1} parent=23 // pred_fallthru
          _
        %p273 = scmp.lt.s32.totalorder %s19, 1
        %s274 = scalar_select %p273, %s19, 1
        %s275 = scalar_lea.vmem %s1, %s274
        // Predicated region
        $region37: #{tpu_custom_call.1} parent=23 // pred_check
          %p276 = pneg %p73
        $region38: #{tpu_custom_call.1} parent=23 // pred_check_branch
          %278 = sbr.rel (%p276) target = $region40
        $region39: #{tpu_custom_call.1} parent=23 // pred_region
          _
        $region40: #{tpu_custom_call.1} parent=23 // pred_fallthru
          _
      $region24: #{tpu_custom_call.1} parent=5 // pred_fallthru
        _
      %p279 = scmp.le.s32.totalorder 2, %s10
      // Predicated region
      $region41: #{tpu_custom_call.1} parent=5 // pred_check
        %p280 = pneg %p279
      $region42: #{tpu_custom_call.1} parent=5 // pred_check_branch
        %282 = sbr.rel (%p280) target = $region44
      $region43: #{tpu_custom_call.1} parent=5 // pred_region
        %s283 = ssub.s32 %s10, 2
        // Predicated region
        $region45: #{tpu_custom_call.1} parent=43 // pred_check
          %p284 = pneg %p79
        $region46: #{tpu_custom_call.1} parent=43 // pred_check_branch
          %286 = sbr.rel (%p284) target = $region48
        $region47: #{tpu_custom_call.1} parent=43 // pred_region
          %p287 = scmp.lt.s32.totalorder %s21, 1
          %s288 = scalar_select %p287, %s21, 1
          %s289 = scalar_lea.vmem %s1, %s288
        $region48: #{tpu_custom_call.1} parent=43 // pred_fallthru
          _
      $region44: #{tpu_custom_call.1} parent=5 // pred_fallthru
        _
    $region6: #{tpu_custom_call.1} parent=1 // loop_footer
      %s14 = sadd.s32 1, %s10
    $region7: #{tpu_custom_call.1} parent=1 // loop_footer_branch
      %9 = sbr.rel target = $region3
    $region8: #{tpu_custom_call.1} parent=1 // loop_exit
      _
    %290 = vsyncpa [#allocation5], 1
    %s291 = scalar_lea.sflag [#allocation5], 1
    %292 = vsyncpa %s291, 1

</llo_original>
